<compile_context>
chip_gen: v6e
topology: v6e:2x2x1
jax: 0.10.0
libtpu: 0.0.40
codegen_flags: <defaults>
</compile_context>

<pallas_src>
import jax
import jax.numpy as jnp
from jax.experimental import pallas as pl
from jax.experimental.pallas import tpu as pltpu

# ----------------------------- sizes -----------------------------------------
N_NODES = 16      # number of graph nodes (demo size)
IN_DEG = 8        # fixed in-degree per node (mailbox depth)
FEAT = 32         # in_feat == out_feat
NUM_RELS = 4


# ----------------------------- Pallas kernel ---------------------------------
def union_rgat_kernel(h_src_ref,   # [TN, D, FP]  gathered src features (bf16)
                      rel_ref,     # [TN, D, FP]  gathered relation embeddings (bf16)
                      h_ref,       # [TN, FP]     dst node features (f32)
                      prev_ref,    # [TN, FP]     prev_h (f32)
                      vecs_ref,    # [8, FP]      rows: v_s, v_d, v_r, skip_b
                      mats_ref,    # [2*FP, FP]   [loop_w ; skip_w] padded
                      out_ref):    # [TN, FP]
    fp = h_ref.shape[1]

    hs = h_src_ref[...].astype(jnp.float32)      # [TN, D, FP]
    rl = rel_ref[...].astype(jnp.float32)        # [TN, D, FP]
    hd = h_ref[...]                              # [TN, FP]
    pv = prev_ref[...]                           # [TN, FP]

    v_s = vecs_ref[0:1, :]                       # [1, FP]  (attn_fc row-block @ w2)
    v_d = vecs_ref[1:2, :]
    v_r = vecs_ref[2:3, :]
    b_sk = vecs_ref[3:4, :]                      # skip_connect_bias
    loop_w = mats_ref[0:fp, :]                   # [FP, FP]
    skip_w = mats_ref[fp:2 * fp, :]              # [FP, FP]

    # ---- attention scores: attn_fc2 folded into attn_fc (exact) -------------
    # e[n, d] = hs[n,d,:]·v_s + rl[n,d,:]·v_r + hd[n,:]·v_d
    e = jnp.sum(hs * v_s + rl * v_r, axis=-1, keepdims=True)          # [TN, D, 1]
    e = e + jnp.sum(hd * v_d, axis=-1, keepdims=True)[:, :, None]     # + dst term
    # leaky_relu, negative_slope = 0.01 (PyTorch default)
    e = jnp.where(e > 0.0, e, 0.01 * e)

    # ---- per-destination softmax over the D incoming edges -------------------
    m = jnp.max(e, axis=1, keepdims=True)                              # [TN, 1, 1]
    p = jnp.exp(e - m)
    alpha = p * pl.reciprocal(jnp.sum(p, axis=1, keepdims=True), approx=True)

    # ---- weighted aggregation of source features -----------------------------
    h_new = jnp.sum(alpha * hs, axis=1)                                # [TN, FP]

    # ---- self-loop + skip gate: tile-wide MXU matmuls -------------------------
    loop_msg = jnp.dot(hd, loop_w, preferred_element_type=jnp.float32)
    sw = jax.nn.sigmoid(jnp.dot(pv, skip_w, preferred_element_type=jnp.float32) + b_sk)

    node = sw * (h_new + loop_msg) + (1.0 - sw) * pv

    # activation = relu; single per-tile lane-dense store
    out_ref[...] = jnp.maximum(node, 0.0).astype(out_ref.dtype)
    # TODO(synk): dropout is identity at p=0 / inference, so it is omitted.


# ----------------------------- wrapper ---------------------------------------
def _choose_tile_nodes(n, max_tile=256):
    # Big tiles amortize the ~0.35us per-grid-step overhead; cap so the
    # double-buffered bf16 mailboxes stay well inside v7x's 64 MiB VMEM, and
    # keep multiple grid steps for large graphs so both v7x TensorCores get
    # work via the "parallel" node axis.
    if n <= max_tile:
        return n
    for tn in range(max_tile, 7, -8):
        if n % tn == 0:
            return tn
    return n  # fallback: single tile


def union_rgat_forward(h, prev_h, emb_rel, src_idx, etype, params,
                       mailbox_dtype=jnp.bfloat16, tile_nodes=None):
    n, f = h.shape
    d = src_idx.shape[1]
    fp = ((f + 127) // 128) * 128            # lane-dense feature width
    pad = fp - f

    tn = tile_nodes if tile_nodes is not None else _choose_tile_nodes(n)
    assert n % tn == 0

    # Glue: gathers (DGL index_select) + lane padding, in plain JAX.
    h_src_mail = jnp.pad(h[src_idx], ((0, 0), (0, 0), (0, pad))).astype(mailbox_dtype)
    rel_mail = jnp.pad(emb_rel[etype], ((0, 0), (0, 0), (0, pad))).astype(mailbox_dtype)
    h_p = jnp.pad(h, ((0, 0), (0, pad)))
    prev_p = jnp.pad(prev_h, ((0, 0), (0, pad)))

    # Fold attn_fc2 into attn_fc (exact: `a` only feeds attn_fc2) and pack the
    # small parameters into two lane-dense slabs (2 constant weight DMAs).
    v_s = (params["w1s"] @ params["w2"])[:, 0]
    v_d = (params["w1d"] @ params["w2"])[:, 0]
    v_r = (params["w1r"] @ params["w2"])[:, 0]
    vecs = jnp.zeros((8, fp), jnp.float32)
    vecs = vecs.at[0, :f].set(v_s).at[1, :f].set(v_d).at[2, :f].set(v_r)
    vecs = vecs.at[3, :f].set(params["skip_b"])
    mats = jnp.zeros((2 * fp, fp), jnp.float32)
    mats = mats.at[:f, :f].set(params["loop_w"])
    mats = mats.at[fp:fp + f, :f].set(params["skip_w"])

    node_map3 = lambda i: (i, 0, 0)
    node_map2 = lambda i: (i, 0)
    const_map = lambda i: (0, 0)

    flops = 2 * 2 * n * fp * fp + 8 * n * d * fp
    bytes_accessed = int(h_src_mail.nbytes + rel_mail.nbytes + h_p.nbytes
                         + prev_p.nbytes + vecs.nbytes + mats.nbytes + n * fp * 4)

    out = pl.pallas_call(
        union_rgat_kernel,
        out_shape=jax.ShapeDtypeStruct((n, fp), jnp.float32),
        grid=(n // tn,),
        in_specs=[
            pl.BlockSpec((tn, d, fp), node_map3),   # h_src_mail
            pl.BlockSpec((tn, d, fp), node_map3),   # rel_mail
            pl.BlockSpec((tn, fp), node_map2),      # h (dst / self-loop input)
            pl.BlockSpec((tn, fp), node_map2),      # prev_h
            pl.BlockSpec((8, fp), const_map),       # packed folded vectors + bias
            pl.BlockSpec((2 * fp, fp), const_map),  # packed loop_w / skip_w
        ],
        out_specs=pl.BlockSpec((tn, fp), node_map2),
        compiler_params=pltpu.CompilerParams(
            dimension_semantics=("parallel",),
            vmem_limit_bytes=32 * 1024 * 1024),
        cost_estimate=pl.CostEstimate(
            flops=flops,
            transcendentals=n * (d + fp),
            bytes_accessed=bytes_accessed),
    )(h_src_mail, rel_mail, h_p, prev_p, vecs, mats)

    return out[:, :f]


# ----------------------------- reference (plain JAX) --------------------------
def union_rgat_reference(h, prev_h, emb_rel, src_idx, etype, params,
                         mailbox_dtype=jnp.bfloat16):
    # Same bf16 quantization of the gathered mailbox tensors as the kernel;
    # all math in f32 with the unfolded attn_fc / attn_fc2 weights.
    hs = h[src_idx].astype(mailbox_dtype).astype(jnp.float32)   # [N, D, F]
    rl = emb_rel[etype].astype(mailbox_dtype).astype(jnp.float32)
    hd = h[:, None, :]                                          # [N, 1, F]
    a = hs @ params["w1s"] + hd @ params["w1d"] + rl @ params["w1r"]
    e = a @ params["w2"]                                        # [N, D, 1]
    e = jnp.where(e > 0, e, 0.01 * e)
    alpha = jax.nn.softmax(e, axis=1)
    h_new = jnp.sum(alpha * hs, axis=1)                         # [N, F]
    node = h_new + h @ params["loop_w"]
    sw = jax.nn.sigmoid(prev_h @ params["skip_w"] + params["skip_b"])
    node = sw * node + (1.0 - sw) * prev_h
    return jnp.maximum(node, 0.0)


# ----------------------------- param init ------------------------------------
def xavier_uniform(key, shape, gain):
    fan_in, fan_out = shape[0], shape[1]
    bound = gain * jnp.sqrt(6.0 / (fan_in + fan_out))
    return jax.random.uniform(key, shape, jnp.float32, -bound, bound)


def make_params(key, f):
    gain = jnp.sqrt(2.0)  # calculate_gain('relu')
    ks = jax.random.split(key, 4)
    # attn_fc: Linear(3F -> F, bias=False); weight [F, 3F]; y = x @ W.T.
    attn_fc_w = xavier_uniform(ks[0], (f, 3 * f), gain)
    w_t = attn_fc_w.T                                           # [3F, F]
    w1s, w1d, w1r = w_t[:f], w_t[f:2 * f], w_t[2 * f:]
    # attn_fc2: Linear(F -> 1, bias=False); pass transposed.
    attn_fc2_w = xavier_uniform(ks[1], (1, f), gain)
    w2 = attn_fc2_w.T                                           # [F, 1]
    loop_w = xavier_uniform(ks[2], (f, f), gain)                # loop_weight
    skip_w = xavier_uniform(ks[3], (f, f), gain)                # skip_connect_weight
    skip_b = jnp.zeros((f,), jnp.float32)                       # skip_connect_bias
    # weight_neighbor / evolve_loop_weight exist in __init__ but are unused in forward().
    return {"w1s": w1s, "w1d": w1d, "w1r": w1r, "w2": w2,
            "loop_w": loop_w, "skip_w": skip_w, "skip_b": skip_b}


# ----------------------------- main -------------------------------------------
if __name__ == "__main__":
    key = jax.random.PRNGKey(0)
    k_h, k_prev, k_rel, k_src, k_type, k_par = jax.random.split(key, 6)

    h = jax.random.normal(k_h, (N_NODES, FEAT), jnp.float32)          # g.ndata['h']
    prev_h = jax.random.normal(k_prev, (N_NODES, FEAT), jnp.float32)  # prev layer output
    emb_rel = jax.random.normal(k_rel, (NUM_RELS, FEAT), jnp.float32)
    src_idx = jax.random.randint(k_src, (N_NODES, IN_DEG), 0, N_NODES)
    etype = jax.random.randint(k_type, (N_NODES, IN_DEG), 0, NUM_RELS)

    params = make_params(k_par, FEAT)

    out = union_rgat_forward(h, prev_h, emb_rel, src_idx, etype, params)
    out = jax.block_until_ready(out)

    ref = union_rgat_reference(h, prev_h, emb_rel, src_idx, etype, params)
    ref = jax.block_until_ready(ref)

    assert out.shape == (N_NODES, FEAT)
    max_err = float(jnp.max(jnp.abs(out - ref)))
    assert max_err < 2e-2, f"mismatch vs reference: {max_err}"
    print("KERNEL_OK")
</pallas_src>

<mosaic_0001>
module attributes {stable_mosaic.version = 11 : i64} {
  func.func @union_rgat_kernel(%arg0: i32, %arg1: memref<16x8x128xbf16, #tpu.memory_space<vmem>>, %arg2: memref<16x8x128xbf16, #tpu.memory_space<vmem>>, %arg3: memref<16x128xf32, #tpu.memory_space<vmem>>, %arg4: memref<16x128xf32, #tpu.memory_space<vmem>>, %arg5: memref<8x128xf32, #tpu.memory_space<vmem>>, %arg6: memref<256x128xf32, #tpu.memory_space<vmem>>, %arg7: memref<16x128xf32, #tpu.memory_space<vmem>>) attributes {dimension_semantics = [#tpu.dimension_semantics<parallel>], iteration_bounds = array<i64: 1>, scalar_prefetch = 0 : i64, scratch_operands = 0 : i64, tpu.core_type = #tpu.core_type<tc>, window_params = [{transform_indices = @transform_0, window_bounds = array<i64: 16, 8, 128>}, {transform_indices = @transform_1, window_bounds = array<i64: 16, 8, 128>}, {transform_indices = @transform_2, window_bounds = array<i64: 16, 128>}, {transform_indices = @transform_3, window_bounds = array<i64: 16, 128>}, {pipeline_mode = #tpu.pipeline_mode<synchronous>, transform_indices = @transform_4, window_bounds = array<i64: 8, 128>}, {pipeline_mode = #tpu.pipeline_mode<synchronous>, transform_indices = @transform_5, window_bounds = array<i64: 256, 128>}, {transform_indices = @transform_6, window_bounds = array<i64: 16, 128>}]} {
    %c0 = arith.constant 0 : index
    %c0_0 = arith.constant 0 : index
    %c0_1 = arith.constant 0 : index
    %0 = vector.load %arg1[%c0, %c0_0, %c0_1] : memref<16x8x128xbf16, #tpu.memory_space<vmem>>, vector<16x8x128xbf16>
    %1 = arith.extf %0 : vector<16x8x128xbf16> to vector<16x8x128xf32>
    %c0_2 = arith.constant 0 : index
    %c0_3 = arith.constant 0 : index
    %c0_4 = arith.constant 0 : index
    %2 = vector.load %arg2[%c0_2, %c0_3, %c0_4] : memref<16x8x128xbf16, #tpu.memory_space<vmem>>, vector<16x8x128xbf16>
    %3 = arith.extf %2 : vector<16x8x128xbf16> to vector<16x8x128xf32>
    %c0_5 = arith.constant 0 : index
    %c0_6 = arith.constant 0 : index
    %4 = vector.load %arg3[%c0_5, %c0_6] : memref<16x128xf32, #tpu.memory_space<vmem>>, vector<16x128xf32>
    %c0_7 = arith.constant 0 : index
    %c0_8 = arith.constant 0 : index
    %5 = vector.load %arg4[%c0_7, %c0_8] : memref<16x128xf32, #tpu.memory_space<vmem>>, vector<16x128xf32>
    %c0_9 = arith.constant 0 : index
    %c0_10 = arith.constant 0 : index
    %6 = vector.load %arg5[%c0_9, %c0_10] : memref<8x128xf32, #tpu.memory_space<vmem>>, vector<1x128xf32>
    %c1 = arith.constant 1 : index
    %c0_11 = arith.constant 0 : index
    %7 = vector.load %arg5[%c1, %c0_11] : memref<8x128xf32, #tpu.memory_space<vmem>>, vector<1x128xf32>
    %c2 = arith.constant 2 : index
    %c0_12 = arith.constant 0 : index
    %8 = vector.load %arg5[%c2, %c0_12] : memref<8x128xf32, #tpu.memory_space<vmem>>, vector<1x128xf32>
    %c3 = arith.constant 3 : index
    %c0_13 = arith.constant 0 : index
    %9 = vector.load %arg5[%c3, %c0_13] : memref<8x128xf32, #tpu.memory_space<vmem>>, vector<1x128xf32>
    %c0_14 = arith.constant 0 : index
    %c0_15 = arith.constant 0 : index
    %10 = vector.load %arg6[%c0_14, %c0_15] : memref<256x128xf32, #tpu.memory_space<vmem>>, vector<128x128xf32>
    %c128 = arith.constant 128 : index
    %c0_16 = arith.constant 0 : index
    %11 = vector.load %arg6[%c128, %c0_16] : memref<256x128xf32, #tpu.memory_space<vmem>>, vector<128x128xf32>
    %12 = vector.shape_cast %6 : vector<1x128xf32> to vector<1x1x128xf32>
    %13 = vector.broadcast %12 : vector<1x1x128xf32> to vector<16x8x128xf32>
    %14 = arith.mulf %1, %13 : vector<16x8x128xf32>
    %15 = vector.shape_cast %8 : vector<1x128xf32> to vector<1x1x128xf32>
    %16 = vector.broadcast %15 : vector<1x1x128xf32> to vector<16x8x128xf32>
    %17 = arith.mulf %3, %16 : vector<16x8x128xf32>
    %18 = arith.addf %14, %17 : vector<16x8x128xf32>
    %cst = arith.constant dense<0.000000e+00> : vector<16x8xf32>
    %19 = vector.multi_reduction <add>, %18, %cst [2] : vector<16x8x128xf32> to vector<16x8xf32>
    %20 = vector.shape_cast %19 : vector<16x8xf32> to vector<16x8x1xf32>
    %21 = vector.broadcast %7 : vector<1x128xf32> to vector<16x128xf32>
    %22 = arith.mulf %4, %21 : vector<16x128xf32>
    %cst_17 = arith.constant dense<0.000000e+00> : vector<16xf32>
    %23 = vector.multi_reduction <add>, %22, %cst_17 [1] : vector<16x128xf32> to vector<16xf32>
    %24 = vector.shape_cast %23 : vector<16xf32> to vector<16x1xf32>
    %25 = vector.shape_cast %24 : vector<16x1xf32> to vector<16x1x1xf32>
    %26 = vector.broadcast %25 : vector<16x1x1xf32> to vector<16x8x1xf32>
    %27 = arith.addf %20, %26 : vector<16x8x1xf32>
    %cst_18 = arith.constant 0.000000e+00 : f32
    %28 = vector.broadcast %cst_18 : f32 to vector<16x8x1xf32>
    %29 = arith.cmpf ogt, %27, %28 : vector<16x8x1xf32>
    %cst_19 = arith.constant 0.00999999977 : f32
    %30 = vector.broadcast %cst_19 : f32 to vector<16x8x1xf32>
    %31 = arith.mulf %30, %27 : vector<16x8x1xf32>
    %32 = arith.select %29, %27, %31 : vector<16x8x1xi1>, vector<16x8x1xf32>
    %cst_20 = arith.constant dense<0xFF800000> : vector<16x1xf32>
    %33 = vector.multi_reduction <maximumf>, %32, %cst_20 [1] : vector<16x8x1xf32> to vector<16x1xf32>
    %34 = vector.shape_cast %33 : vector<16x1xf32> to vector<16x1x1xf32>
    %35 = vector.broadcast %34 : vector<16x1x1xf32> to vector<16x8x1xf32>
    %36 = arith.subf %32, %35 : vector<16x8x1xf32>
    %37 = math.exp %36 : vector<16x8x1xf32>
    %cst_21 = arith.constant dense<0.000000e+00> : vector<16x1xf32>
    %38 = vector.multi_reduction <add>, %37, %cst_21 [1] : vector<16x8x1xf32> to vector<16x1xf32>
    %39 = vector.shape_cast %38 : vector<16x1xf32> to vector<16x1x1xf32>
    %40 = tpu.reciprocal %39 {approx = true} : vector<16x1x1xf32> -> vector<16x1x1xf32>
    %41 = vector.broadcast %40 : vector<16x1x1xf32> to vector<16x8x1xf32>
    %42 = arith.mulf %37, %41 : vector<16x8x1xf32>
    %43 = vector.broadcast %42 : vector<16x8x1xf32> to vector<16x8x128xf32>
    %44 = arith.mulf %43, %1 : vector<16x8x128xf32>
    %cst_22 = arith.constant dense<0.000000e+00> : vector<16x128xf32>
    %45 = vector.multi_reduction <add>, %44, %cst_22 [1] : vector<16x8x128xf32> to vector<16x128xf32>
    %cst_23 = arith.constant dense<0.000000e+00> : vector<16x128xf32>
    %46 = tpu.matmul %4, %10, %cst_23 {dimension_numbers = #tpu.dot_dimension_numbers<[1], [0], [0], [1], [0, 0, 1, 1], [], []>} : vector<16x128xf32>, vector<128x128xf32>, vector<16x128xf32> -> vector<16x128xf32>
    %cst_24 = arith.constant dense<0.000000e+00> : vector<16x128xf32>
    %47 = tpu.matmul %5, %11, %cst_24 {dimension_numbers = #tpu.dot_dimension_numbers<[1], [0], [0], [1], [0, 0, 1, 1], [], []>} : vector<16x128xf32>, vector<128x128xf32>, vector<16x128xf32> -> vector<16x128xf32>
    %48 = vector.broadcast %9 : vector<1x128xf32> to vector<16x128xf32>
    %49 = arith.addf %47, %48 : vector<16x128xf32>
    %50 = arith.negf %49 : vector<16x128xf32>
    %51 = math.exp %50 : vector<16x128xf32>
    %cst_25 = arith.constant 1.000000e+00 : f32
    %52 = vector.broadcast %cst_25 : f32 to vector<16x128xf32>
    %53 = arith.addf %52, %51 : vector<16x128xf32>
    %54 = arith.divf %52, %53 : vector<16x128xf32>
    %55 = arith.addf %45, %46 : vector<16x128xf32>
    %56 = arith.mulf %54, %55 : vector<16x128xf32>
    %cst_26 = arith.constant 1.000000e+00 : f32
    %57 = vector.broadcast %cst_26 : f32 to vector<16x128xf32>
    %58 = arith.subf %57, %54 : vector<16x128xf32>
    %59 = arith.mulf %58, %5 : vector<16x128xf32>
    %60 = arith.addf %56, %59 : vector<16x128xf32>
    %cst_27 = arith.constant 0.000000e+00 : f32
    %61 = vector.broadcast %cst_27 : f32 to vector<16x128xf32>
    %62 = arith.maximumf %60, %61 : vector<16x128xf32>
    %c0_28 = arith.constant 0 : index
    %c0_29 = arith.constant 0 : index
    %63 = vector.load %arg7[%c0_28, %c0_29] : memref<16x128xf32, #tpu.memory_space<vmem>>, vector<16x128xf32>
    tpu.vector_store %arg7[%c0_28, %c0_29], %62 {strides = array<i32>} : memref<16x128xf32, #tpu.memory_space<vmem>>, vector<16x128xf32>,
    return
  }
  func.func @transform_0(%arg0: i32) -> (i32, i32, i32) {
    %c0_i32 = arith.constant 0 : i32
    %c0_i32_0 = arith.constant 0 : i32
    %c0_i32_1 = arith.constant 0 : i32
    return %arg0, %c0_i32, %c0_i32_0 : i32, i32, i32
  }
  func.func @transform_1(%arg0: i32) -> (i32, i32, i32) {
    %c0_i32 = arith.constant 0 : i32
    %c0_i32_0 = arith.constant 0 : i32
    %c0_i32_1 = arith.constant 0 : i32
    return %arg0, %c0_i32, %c0_i32_0 : i32, i32, i32
  }
  func.func @transform_2(%arg0: i32) -> (i32, i32) {
    %c0_i32 = arith.constant 0 : i32
    %c0_i32_0 = arith.constant 0 : i32
    return %arg0, %c0_i32 : i32, i32
  }
  func.func @transform_3(%arg0: i32) -> (i32, i32) {
    %c0_i32 = arith.constant 0 : i32
    %c0_i32_0 = arith.constant 0 : i32
    return %arg0, %c0_i32 : i32, i32
  }
  func.func @transform_4(%arg0: i32) -> (i32, i32) {
    %c0_i32 = arith.constant 0 : i32
    %c0_i32_0 = arith.constant 0 : i32
    %c0_i32_1 = arith.constant 0 : i32
    return %c0_i32, %c0_i32_0 : i32, i32
  }
  func.func @transform_5(%arg0: i32) -> (i32, i32) {
    %c0_i32 = arith.constant 0 : i32
    %c0_i32_0 = arith.constant 0 : i32
    %c0_i32_1 = arith.constant 0 : i32
    return %c0_i32, %c0_i32_0 : i32, i32
  }
  func.func @transform_6(%arg0: i32) -> (i32, i32) {
    %c0_i32 = arith.constant 0 : i32
    %c0_i32_0 = arith.constant 0 : i32
    return %arg0, %c0_i32 : i32, i32
  }
}

</mosaic_0001>

<llo_original>
// kernel: tpu_custom_call.1
$region0: #{tpu_custom_call.1}
  #allocation0 [shape = 'u32[]', space=smem, size = 0x4, offset = 0x4, fixed_abs, tag = 'smem constant byte address 0x4 - core index']
  #allocation1 [shape = 'u32[144,128]{1,0:T(1,128)}', space=vmem, size = 0x12000, scoped, tag = 'internal scratch']
  %s0 = inlined_call_operand.hbm [shape: bf16[16,8,128], index: 0, kind: input, shape index: {}]
  %s1 = inlined_call_operand.hbm [shape: bf16[16,8,128], index: 1, kind: input, shape index: {}]
  %s2 = inlined_call_operand.hbm [shape: f32[16,128], index: 2, kind: input, shape index: {}]
  %s3 = inlined_call_operand.hbm [shape: f32[16,128], index: 3, kind: input, shape index: {}]
  %s4 = inlined_call_operand.hbm [shape: f32[8,128], index: 4, kind: input, shape index: {}]
  %s5 = inlined_call_operand.hbm [shape: f32[256,128], index: 5, kind: input, shape index: {}]
  %s6 = inlined_call_operand.hbm [shape: f32[16,128], index: 6, kind: output, shape index: {}]
  %s7 = sld [smem:[#allocation0]]
  $region58: #{tpu_custom_call.1} parent=0
    _
  %s9 = ssub.s32 1, %s7
  %s10 = scalar_select 0, %s9, %s7
  $region1: #{tpu_custom_call.1} parent=0
    #allocation2 [shape = 'u8[32768]{0}', space=vmem, size = 0x8000, scoped, tag = 'input window, operand 0, single buffered']
    #allocation3 [shape = 's32[1]{0}', space=sflag, size = 0x4, scoped, tag = 'scoped memory for tpu_custom_call.1']
    #allocation4 [shape = 's32[1]{0}', space=sflag, size = 0x4, scoped, tag = 'scoped memory for tpu_custom_call.1']
    #allocation5 [shape = 'u8[32768]{0}', space=vmem, size = 0x8000, scoped, tag = 'input window, operand 1, single buffered']
    #allocation6 [shape = 's32[1]{0}', space=sflag, size = 0x4, scoped, tag = 'scoped memory for tpu_custom_call.1']
    #allocation7 [shape = 'u8[8192]{0}', space=vmem, size = 0x2000, scoped, tag = 'input window, operand 2, single buffered']
    #allocation8 [shape = 'u8[8192]{0}', space=vmem, size = 0x2000, scoped, tag = 'input window, operand 3, single buffered']
    #allocation9 [shape = 's32[1]{0}', space=sflag, size = 0x4, scoped, tag = 'scoped memory for tpu_custom_call.1']
    #allocation10 [shape = 'u8[4096]{0}', space=vmem, size = 0x1000, scoped, tag = 'input window, operand 4, single buffered']
    #allocation11 [shape = 'u8[131072]{0}', space=vmem, size = 0x20000, scoped, tag = 'input window, operand 5, single buffered']
    #allocation12 [shape = 's32[1]{0}', space=sflag, size = 0x4, scoped, tag = 'scoped memory for tpu_custom_call.1']
    #allocation13 [shape = 'u8[8192]{0}', space=vmem, size = 0x2000, scoped, tag = 'output window, operand 0, single buffered']
    %11 = vsyncpa [#allocation3], 0
    %12 = vsyncpa [#allocation6], 0
    %13 = vsyncpa [#allocation9], 0
    %14 = vsyncpa [#allocation12], 0
    %15 = vsyncpa [#allocation4], 0
    // Predicated region
    $region2: #{tpu_custom_call.1} parent=1 // pred_check
      _
    $region3: #{tpu_custom_call.1} parent=1 // pred_check_branch
      %17 = sbr.rel (0) target = $region5
    $region4: #{tpu_custom_call.1} parent=1 // pred_region
      %s19 = ssub.s32 1024, 1024
      %20 = vsyncadd [#allocation3], %s19
      %s21 = sshll.u32 [#allocation2], 4
      %s22 = int_to_ptr.vmem [resolvable:$true] %s21
      %27 = dma.hbm_to_vmem [thread:$0]  %s0, 1024, %s22, [#allocation3], 64, 64, 4
    $region5: #{tpu_custom_call.1} parent=1 // pred_fallthru
      _
    // Predicated region
    $region6: #{tpu_custom_call.1} parent=1 // pred_check
      _
    $region7: #{tpu_custom_call.1} parent=1 // pred_check_branch
      %29 = sbr.rel (0) target = $region9
    $region8: #{tpu_custom_call.1} parent=1 // pred_region
      %s31 = ssub.s32 1024, 1024
      %32 = vsyncadd [#allocation6], %s31
      %s33 = sshll.u32 [#allocation5], 4
      %s34 = int_to_ptr.vmem [resolvable:$true] %s33
      %39 = dma.hbm_to_vmem [thread:$0]  %s1, 1024, %s34, [#allocation6], 64, 64, 4
    $region9: #{tpu_custom_call.1} parent=1 // pred_fallthru
      _
    // Predicated region
    $region10: #{tpu_custom_call.1} parent=1 // pred_check
      _
    $region11: #{tpu_custom_call.1} parent=1 // pred_check_branch
      %41 = sbr.rel (0) target = $region13
    $region12: #{tpu_custom_call.1} parent=1 // pred_region
      %s43 = ssub.s32 256, 256
      %44 = vsyncadd [#allocation6], %s43
      %s45 = sshll.u32 [#allocation7], 4
      %s46 = int_to_ptr.vmem [resolvable:$true] %s45
      %51 = dma.hbm_to_vmem [thread:$0]  %s2, 256, %s46, [#allocation6], 128, 128, 8
    $region13: #{tpu_custom_call.1} parent=1 // pred_fallthru
      _
    // Predicated region
    $region14: #{tpu_custom_call.1} parent=1 // pred_check
      _
    $region15: #{tpu_custom_call.1} parent=1 // pred_check_branch
      %53 = sbr.rel (0) target = $region17
    $region16: #{tpu_custom_call.1} parent=1 // pred_region
      %s55 = ssub.s32 256, 256
      %56 = vsyncadd [#allocation9], %s55
      %s57 = sshll.u32 [#allocation8], 4
      %s58 = int_to_ptr.vmem [resolvable:$true] %s57
      %63 = dma.hbm_to_vmem [thread:$0]  %s3, 256, %s58, [#allocation9], 128, 128, 8
    $region17: #{tpu_custom_call.1} parent=1 // pred_fallthru
      _
    // Predicated region
    $region18: #{tpu_custom_call.1} parent=1 // pred_check
      _
    $region19: #{tpu_custom_call.1} parent=1 // pred_check_branch
      %65 = sbr.rel (0) target = $region21
    $region20: #{tpu_custom_call.1} parent=1 // pred_region
      %s67 = ssub.s32 128, 128
      %68 = vsyncadd [#allocation9], %s67
      %s70 = sshll.u32 [#allocation10], 4
      %s71 = int_to_ptr.vmem [resolvable:$true] %s70
      %73 = dma.hbm_to_vmem [thread:$0]  %s4, 128, %s71, [#allocation9]
    $region21: #{tpu_custom_call.1} parent=1 // pred_fallthru
      _
    // Predicated region
    $region22: #{tpu_custom_call.1} parent=1 // pred_check
      _
    $region23: #{tpu_custom_call.1} parent=1 // pred_check_branch
      %75 = sbr.rel (0) target = $region25
    $region24: #{tpu_custom_call.1} parent=1 // pred_region
      %s77 = ssub.s32 4096, 4096
      %78 = vsyncadd [#allocation12], %s77
      %s79 = sshll.u32 [#allocation11], 4
      %s80 = int_to_ptr.vmem [resolvable:$true] %s79
      %85 = dma.hbm_to_vmem [thread:$0]  %s5, 4096, %s80, [#allocation12], 128, 128, 8
    $region25: #{tpu_custom_call.1} parent=1 // pred_fallthru
      _
    // Predicated region
    $region26: #{tpu_custom_call.1} parent=1 // pred_check
      _
    $region27: #{tpu_custom_call.1} parent=1 // pred_check_branch
      %87 = sbr.rel (0) target = $region29
    $region28: #{tpu_custom_call.1} parent=1 // pred_region
      %88 = dma.done [#allocation3], 1024
    $region29: #{tpu_custom_call.1} parent=1 // pred_fallthru
      _
    // Predicated region
    $region30: #{tpu_custom_call.1} parent=1 // pred_check
      _
    $region31: #{tpu_custom_call.1} parent=1 // pred_check_branch
      %90 = sbr.rel (0) target = $region33
    $region32: #{tpu_custom_call.1} parent=1 // pred_region
      %91 = dma.done [#allocation6], 1024
    $region33: #{tpu_custom_call.1} parent=1 // pred_fallthru
      _
    // Predicated region
    $region34: #{tpu_custom_call.1} parent=1 // pred_check
      _
    $region35: #{tpu_custom_call.1} parent=1 // pred_check_branch
      %93 = sbr.rel (0) target = $region37
    $region36: #{tpu_custom_call.1} parent=1 // pred_region
      %94 = dma.done [#allocation6], 256
    $region37: #{tpu_custom_call.1} parent=1 // pred_fallthru
      _
    // Predicated region
    $region38: #{tpu_custom_call.1} parent=1 // pred_check
      _
    $region39: #{tpu_custom_call.1} parent=1 // pred_check_branch
      %96 = sbr.rel (0) target = $region41
    $region40: #{tpu_custom_call.1} parent=1 // pred_region
      %97 = dma.done [#allocation9], 256
    $region41: #{tpu_custom_call.1} parent=1 // pred_fallthru
      _
    // Predicated region
    $region42: #{tpu_custom_call.1} parent=1 // pred_check
      _
    $region43: #{tpu_custom_call.1} parent=1 // pred_check_branch
      %99 = sbr.rel (0) target = $region45
    $region44: #{tpu_custom_call.1} parent=1 // pred_region
      %100 = dma.done [#allocation9], 128
    $region45: #{tpu_custom_call.1} parent=1 // pred_fallthru
      _
    // Predicated region
    $region46: #{tpu_custom_call.1} parent=1 // pred_check
      _
    $region47: #{tpu_custom_call.1} parent=1 // pred_check_branch
      %102 = sbr.rel (0) target = $region49
    $region48: #{tpu_custom_call.1} parent=1 // pred_region
      %103 = dma.done [#allocation12], 4096
    $region49: #{tpu_custom_call.1} parent=1 // pred_fallthru
      _
    %v104 = vld [vmem:[#allocation2] sm:$0xf]
    %v105 = vld [vmem:[#allocation2 + $0x4] sm:$0xf]
    %v106 = vld [vmem:[#allocation2 + $0x8] sm:$0xf]
    %v107 = vld [vmem:[#allocation2 + $0xc] sm:$0xf]
    %v108 = vld [vmem:[#allocation2 + $0x10] sm:$0xf]
    %v109 = vld [vmem:[#allocation2 + $0x14] sm:$0xf]
    %v110 = vld [vmem:[#allocation2 + $0x18] sm:$0xf]
    %v111 = vld [vmem:[#allocation2 + $0x1c] sm:$0xf]
    %v112 = vld [vmem:[#allocation2 + $0x20] sm:$0xf]
    %v113 = vld [vmem:[#allocation2 + $0x24] sm:$0xf]
    %v114 = vld [vmem:[#allocation2 + $0x28] sm:$0xf]
    %v115 = vld [vmem:[#allocation2 + $0x2c] sm:$0xf]
    %v116 = vld [vmem:[#allocation2 + $0x30] sm:$0xf]
    %v117 = vld [vmem:[#allocation2 + $0x34] sm:$0xf]
    %v118 = vld [vmem:[#allocation2 + $0x38] sm:$0xf]
    %v119 = vld [vmem:[#allocation2 + $0x3c] sm:$0xf]
    %v120 = vunpack.c.l.bf16 %v104
    %v121 = vunpack.c.l.bf16 %v105
    %v122 = vunpack.c.l.bf16 %v106
    %v123 = vunpack.c.l.bf16 %v107
    %v124 = vunpack.c.l.bf16 %v108
    %v125 = vunpack.c.l.bf16 %v109
    %v126 = vunpack.c.l.bf16 %v110
    %v127 = vunpack.c.l.bf16 %v111
    %v128 = vunpack.c.l.bf16 %v112
    %v129 = vunpack.c.l.bf16 %v113
    %v130 = vunpack.c.l.bf16 %v114
    %v131 = vunpack.c.l.bf16 %v115
    %v132 = vunpack.c.l.bf16 %v116
    %v133 = vunpack.c.l.bf16 %v117
    %v134 = vunpack.c.l.bf16 %v118
    %v135 = vunpack.c.l.bf16 %v119
    %v136 = vld [vmem:[#allocation5] sm:$0xf]
    %v137 = vld [vmem:[#allocation5 + $0x4] sm:$0xf]
    %v138 = vld [vmem:[#allocation5 + $0x8] sm:$0xf]
    %v139 = vld [vmem:[#allocation5 + $0xc] sm:$0xf]
    %v140 = vld [vmem:[#allocation5 + $0x10] sm:$0xf]
    %v141 = vld [vmem:[#allocation5 + $0x14] sm:$0xf]
    %v142 = vld [vmem:[#allocation5 + $0x18] sm:$0xf]
    %v143 = vld [vmem:[#allocation5 + $0x1c] sm:$0xf]
    %v144 = vld [vmem:[#allocation5 + $0x20] sm:$0xf]
    %v145 = vld [vmem:[#allocation5 + $0x24] sm:$0xf]
    %v146 = vld [vmem:[#allocation5 + $0x28] sm:$0xf]
    %v147 = vld [vmem:[#allocation5 + $0x2c] sm:$0xf]
    %v148 = vld [vmem:[#allocation5 + $0x30] sm:$0xf]
    %v149 = vld [vmem:[#allocation5 + $0x34] sm:$0xf]
    %v150 = vld [vmem:[#allocation5 + $0x38] sm:$0xf]
    %v151 = vld [vmem:[#allocation5 + $0x3c] sm:$0xf]
    %v152 = vunpack.c.l.bf16 %v136
    %v153 = vunpack.c.l.bf16 %v137
    %v154 = vunpack.c.l.bf16 %v138
    %v155 = vunpack.c.l.bf16 %v139
    %v156 = vunpack.c.l.bf16 %v140
    %v157 = vunpack.c.l.bf16 %v141
    %v158 = vunpack.c.l.bf16 %v142
    %v159 = vunpack.c.l.bf16 %v143
    %v160 = vunpack.c.l.bf16 %v144
    %v161 = vunpack.c.l.bf16 %v145
    %v162 = vunpack.c.l.bf16 %v146
    %v163 = vunpack.c.l.bf16 %v147
    %v164 = vunpack.c.l.bf16 %v148
    %v165 = vunpack.c.l.bf16 %v149
    %v166 = vunpack.c.l.bf16 %v150
    %v167 = vunpack.c.l.bf16 %v151
    %v168 = vld [vmem:[#allocation7] sm:$0xff]
    %v169 = vld [vmem:[#allocation7 + $0x8] sm:$0xff]
    %v170 = vld [vmem:[#allocation8] sm:$0xff]
    %v171 = vld [vmem:[#allocation8 + $0x8] sm:$0xff]
    %v172 = vld [vmem:[#allocation10] sm:$0x1]
    %v173 = vld [vmem:[#allocation10 + $0x1] sm:$0x1]
    %v174 = vld [vmem:[#allocation10 + $0x2] sm:$0x1]
    %v175 = vld [vmem:[#allocation10 + $0x3] sm:$0x1]
    %v176 = vld [vmem:[#allocation11] sm:$0xff]
    %v177 = vld [vmem:[#allocation11 + $0x8] sm:$0xff]
    %v178 = vld [vmem:[#allocation11 + $0x10] sm:$0xff]
    %v179 = vld [vmem:[#allocation11 + $0x18] sm:$0xff]
    %v180 = vld [vmem:[#allocation11 + $0x20] sm:$0xff]
    %v181 = vld [vmem:[#allocation11 + $0x28] sm:$0xff]
    %v182 = vld [vmem:[#allocation11 + $0x30] sm:$0xff]
    %v183 = vld [vmem:[#allocation11 + $0x38] sm:$0xff]
    %v184 = vld [vmem:[#allocation11 + $0x40] sm:$0xff]
    %v185 = vld [vmem:[#allocation11 + $0x48] sm:$0xff]
    %v186 = vld [vmem:[#allocation11 + $0x50] sm:$0xff]
    %v187 = vld [vmem:[#allocation11 + $0x58] sm:$0xff]
    %v188 = vld [vmem:[#allocation11 + $0x60] sm:$0xff]
    %v189 = vld [vmem:[#allocation11 + $0x68] sm:$0xff]
    %v190 = vld [vmem:[#allocation11 + $0x70] sm:$0xff]
    %v191 = vld [vmem:[#allocation11 + $0x78] sm:$0xff]
    %v192 = vld [vmem:[#allocation11 + $0x80] sm:$0xff]
    %v193 = vld [vmem:[#allocation11 + $0x88] sm:$0xff]
    %v194 = vld [vmem:[#allocation11 + $0x90] sm:$0xff]
    %v195 = vld [vmem:[#allocation11 + $0x98] sm:$0xff]
    %v196 = vld [vmem:[#allocation11 + $0xa0] sm:$0xff]
    %v197 = vld [vmem:[#allocation11 + $0xa8] sm:$0xff]
    %v198 = vld [vmem:[#allocation11 + $0xb0] sm:$0xff]
    %v199 = vld [vmem:[#allocation11 + $0xb8] sm:$0xff]
    %v200 = vld [vmem:[#allocation11 + $0xc0] sm:$0xff]
    %v201 = vld [vmem:[#allocation11 + $0xc8] sm:$0xff]
    %v202 = vld [vmem:[#allocation11 + $0xd0] sm:$0xff]
    %v203 = vld [vmem:[#allocation11 + $0xd8] sm:$0xff]
    %v204 = vld [vmem:[#allocation11 + $0xe0] sm:$0xff]
    %v205 = vld [vmem:[#allocation11 + $0xe8] sm:$0xff]
    %v206 = vld [vmem:[#allocation11 + $0xf0] sm:$0xff]
    %v207 = vld [vmem:[#allocation11 + $0xf8] sm:$0xff]
    %v208 = vlaneseq
    %v209 = vshrl.u32 %v208, 7
    %v210 = vsub.s32 0, %v209
    %v211 = vrot.slane %v172, %v210
    %v212 = vmul.f32 %v120, %v211
    %v213 = vmul.f32 %v121, %v211
    %v214 = vmul.f32 %v122, %v211
    %v215 = vmul.f32 %v123, %v211
    %v216 = vmul.f32 %v124, %v211
    %v217 = vmul.f32 %v125, %v211
    %v218 = vmul.f32 %v126, %v211
    %v219 = vmul.f32 %v127, %v211
    %v220 = vmul.f32 %v128, %v211
    %v221 = vmul.f32 %v129, %v211
    %v222 = vmul.f32 %v130, %v211
    %v223 = vmul.f32 %v131, %v211
    %v224 = vmul.f32 %v132, %v211
    %v225 = vmul.f32 %v133, %v211
    %v226 = vmul.f32 %v134, %v211
    %v227 = vmul.f32 %v135, %v211
    %v228 = vlaneseq
    %v229 = vshrl.u32 %v228, 7
    %v230 = vsub.s32 0, %v229
    %v231 = vrot.slane %v174, %v230
    %v232 = vmul.f32 %v152, %v231
    %v233 = vmul.f32 %v153, %v231
    %v234 = vmul.f32 %v154, %v231
    %v235 = vmul.f32 %v155, %v231
    %v236 = vmul.f32 %v156, %v231
    %v237 = vmul.f32 %v157, %v231
    %v238 = vmul.f32 %v158, %v231
    %v239 = vmul.f32 %v159, %v231
    %v240 = vmul.f32 %v160, %v231
    %v241 = vmul.f32 %v161, %v231
    %v242 = vmul.f32 %v162, %v231
    %v243 = vmul.f32 %v163, %v231
    %v244 = vmul.f32 %v164, %v231
    %v245 = vmul.f32 %v165, %v231
    %v246 = vmul.f32 %v166, %v231
    %v247 = vmul.f32 %v167, %v231
    %v248 = vadd.f32 %v212, %v232
    %v249 = vadd.f32 %v213, %v233
    %v250 = vadd.f32 %v214, %v234
    %v251 = vadd.f32 %v215, %v235
    %v252 = vadd.f32 %v216, %v236
    %v253 = vadd.f32 %v217, %v237
    %v254 = vadd.f32 %v218, %v238
    %v255 = vadd.f32 %v219, %v239
    %v256 = vadd.f32 %v220, %v240
    %v257 = vadd.f32 %v221, %v241
    %v258 = vadd.f32 %v222, %v242
    %v259 = vadd.f32 %v223, %v243
    %v260 = vadd.f32 %v224, %v244
    %v261 = vadd.f32 %v225, %v245
    %v262 = vadd.f32 %v226, %v246
    %v263 = vadd.f32 %v227, %v247
    %264 = vadd.xlane.f32.xlu0 %v248
    %v265 = vpop.xlane.xlu0 %264
    %266 = vadd.xlane.f32.xlu0 %v249
    %v267 = vpop.xlane.xlu0 %266
    %268 = vadd.xlane.f32.xlu0 %v250
    %v269 = vpop.xlane.xlu0 %268
    %270 = vadd.xlane.f32.xlu0 %v251
    %v271 = vpop.xlane.xlu0 %270
    %272 = vadd.xlane.f32.xlu0 %v252
    %v273 = vpop.xlane.xlu0 %272
    %274 = vadd.xlane.f32.xlu0 %v253
    %v275 = vpop.xlane.xlu0 %274
    %276 = vadd.xlane.f32.xlu0 %v254
    %v277 = vpop.xlane.xlu0 %276
    %278 = vadd.xlane.f32.xlu0 %v255
    %v279 = vpop.xlane.xlu0 %278
    %280 = vadd.xlane.f32.xlu0 %v256
    %v281 = vpop.xlane.xlu0 %280
    %282 = vadd.xlane.f32.xlu0 %v257
    %v283 = vpop.xlane.xlu0 %282
    %284 = vadd.xlane.f32.xlu0 %v258
    %v285 = vpop.xlane.xlu0 %284
    %286 = vadd.xlane.f32.xlu0 %v259
    %v287 = vpop.xlane.xlu0 %286
    %288 = vadd.xlane.f32.xlu0 %v260
    %v289 = vpop.xlane.xlu0 %288
    %290 = vadd.xlane.f32.xlu0 %v261
    %v291 = vpop.xlane.xlu0 %290
    %292 = vadd.xlane.f32.xlu0 %v262
    %v293 = vpop.xlane.xlu0 %292
    %294 = vadd.xlane.f32.xlu0 %v263
    %v295 = vpop.xlane.xlu0 %294
    %v296 = vlaneseq
    %v297 = vshrl.u32 %v296, 7
    %v298 = vsub.s32 0, %v297
    %v299 = vrot.slane %v173, %v298
    %v300 = vmul.f32 %v168, %v299
    %v301 = vmul.f32 %v169, %v299
    %302 = vadd.xlane.f32.xlu0 %v300
    %v303 = vpop.xlane.xlu0 %302
    %304 = vadd.xlane.f32.xlu0 %v301
    %v305 = vpop.xlane.xlu0 %304
    %v308 = vlaneseq
    %v309 = vshrl.u32 %v308, 7
    %v310 = vsub.s32 0, %v309
    %v311 = vrot.slane %v303, %v310
    %v312 = vlaneseq
    %v313 = vshrl.u32 %v312, 7
    %v314 = vsub.s32 1, %v313
    %v315 = vrot.slane %v303, %v314
    %v316 = vlaneseq
    %v317 = vshrl.u32 %v316, 7
    %v318 = vsub.s32 2, %v317
    %v319 = vrot.slane %v303, %v318
    %v320 = vlaneseq
    %v321 = vshrl.u32 %v320, 7
    %v322 = vsub.s32 3, %v321
    %v323 = vrot.slane %v303, %v322
    %v324 = vlaneseq
    %v325 = vshrl.u32 %v324, 7
    %v326 = vsub.s32 4, %v325
    %v327 = vrot.slane %v303, %v326
    %v328 = vlaneseq
    %v329 = vshrl.u32 %v328, 7
    %v330 = vsub.s32 5, %v329
    %v331 = vrot.slane %v303, %v330
    %v332 = vlaneseq
    %v333 = vshrl.u32 %v332, 7
    %v334 = vsub.s32 6, %v333
    %v335 = vrot.slane %v303, %v334
    %v336 = vlaneseq
    %v337 = vshrl.u32 %v336, 7
    %v338 = vsub.s32 7, %v337
    %v339 = vrot.slane %v303, %v338
    %v340 = vlaneseq
    %v341 = vshrl.u32 %v340, 7
    %v342 = vsub.s32 0, %v341
    %v343 = vrot.slane %v305, %v342
    %v344 = vlaneseq
    %v345 = vshrl.u32 %v344, 7
    %v346 = vsub.s32 1, %v345
    %v347 = vrot.slane %v305, %v346
    %v348 = vlaneseq
    %v349 = vshrl.u32 %v348, 7
    %v350 = vsub.s32 2, %v349
    %v351 = vrot.slane %v305, %v350
    %v352 = vlaneseq
    %v353 = vshrl.u32 %v352, 7
    %v354 = vsub.s32 3, %v353
    %v355 = vrot.slane %v305, %v354
    %v356 = vlaneseq
    %v357 = vshrl.u32 %v356, 7
    %v358 = vsub.s32 4, %v357
    %v359 = vrot.slane %v305, %v358
    %v360 = vlaneseq
    %v361 = vshrl.u32 %v360, 7
    %v362 = vsub.s32 5, %v361
    %v363 = vrot.slane %v305, %v362
    %v364 = vlaneseq
    %v365 = vshrl.u32 %v364, 7
    %v366 = vsub.s32 6, %v365
    %v367 = vrot.slane %v305, %v366
    %v368 = vlaneseq
    %v369 = vshrl.u32 %v368, 7
    %v370 = vsub.s32 7, %v369
    %v371 = vrot.slane %v305, %v370
    %v388 = vadd.f32 %v265, %v311
    %v389 = vadd.f32 %v267, %v315
    %v390 = vadd.f32 %v269, %v319
    %v391 = vadd.f32 %v271, %v323
    %v392 = vadd.f32 %v273, %v327
    %v393 = vadd.f32 %v275, %v331
    %v394 = vadd.f32 %v277, %v335
    %v395 = vadd.f32 %v279, %v339
    %v396 = vadd.f32 %v281, %v343
    %v397 = vadd.f32 %v283, %v347
    %v398 = vadd.f32 %v285, %v351
    %v399 = vadd.f32 %v287, %v355
    %v400 = vadd.f32 %v289, %v359
    %v401 = vadd.f32 %v291, %v363
    %v402 = vadd.f32 %v293, %v367
    %v403 = vadd.f32 %v295, %v371
    %vm404 = vcmp.gt.f32.partialorder %v388, 0.0
    %vm405 = vcmp.gt.f32.partialorder %v389, 0.0
    %vm406 = vcmp.gt.f32.partialorder %v390, 0.0
    %vm407 = vcmp.gt.f32.partialorder %v391, 0.0
    %vm408 = vcmp.gt.f32.partialorder %v392, 0.0
    %vm409 = vcmp.gt.f32.partialorder %v393, 0.0
    %vm410 = vcmp.gt.f32.partialorder %v394, 0.0
    %vm411 = vcmp.gt.f32.partialorder %v395, 0.0
    %vm412 = vcmp.gt.f32.partialorder %v396, 0.0
    %vm413 = vcmp.gt.f32.partialorder %v397, 0.0
    %vm414 = vcmp.gt.f32.partialorder %v398, 0.0
    %vm415 = vcmp.gt.f32.partialorder %v399, 0.0
    %vm416 = vcmp.gt.f32.partialorder %v400, 0.0
    %vm417 = vcmp.gt.f32.partialorder %v401, 0.0
    %vm418 = vcmp.gt.f32.partialorder %v402, 0.0
    %vm419 = vcmp.gt.f32.partialorder %v403, 0.0
    %v420 = vmul.f32 %v388, 0.01
    %v421 = vmul.f32 %v389, 0.01
    %v422 = vmul.f32 %v390, 0.01
    %v423 = vmul.f32 %v391, 0.01
    %v424 = vmul.f32 %v392, 0.01
    %v425 = vmul.f32 %v393, 0.01
    %v426 = vmul.f32 %v394, 0.01
    %v427 = vmul.f32 %v395, 0.01
    %v428 = vmul.f32 %v396, 0.01
    %v429 = vmul.f32 %v397, 0.01
    %v430 = vmul.f32 %v398, 0.01
    %v431 = vmul.f32 %v399, 0.01
    %v432 = vmul.f32 %v400, 0.01
    %v433 = vmul.f32 %v401, 0.01
    %v434 = vmul.f32 %v402, 0.01
    %v435 = vmul.f32 %v403, 0.01
    %v436 = vsel %vm404, %v388, %v420
    %v437 = vsel %vm405, %v389, %v421
    %v438 = vsel %vm406, %v390, %v422
    %v439 = vsel %vm407, %v391, %v423
    %v440 = vsel %vm408, %v392, %v424
    %v441 = vsel %vm409, %v393, %v425
    %v442 = vsel %vm410, %v394, %v426
    %v443 = vsel %vm411, %v395, %v427
    %v444 = vsel %vm412, %v396, %v428
    %v445 = vsel %vm413, %v397, %v429
    %v446 = vsel %vm414, %v398, %v430
    %v447 = vsel %vm415, %v399, %v431
    %v448 = vsel %vm416, %v400, %v432
    %v449 = vsel %vm417, %v401, %v433
    %v450 = vsel %vm418, %v402, %v434
    %v451 = vsel %vm419, %v403, %v435
    %v452 = vrot.slane %v436, 4
    %v453 = vmax.f32 %v436, %v452
    %v454 = vrot.slane %v453, 2
    %v455 = vmax.f32 %v453, %v454
    %v456 = vrot.slane %v455, 1
    %v457 = vmax.f32 %v455, %v456
    %v458 = vrot.slane %v437, 4
    %v459 = vmax.f32 %v437, %v458
    %v460 = vrot.slane %v459, 2
    %v461 = vmax.f32 %v459, %v460
    %v462 = vrot.slane %v461, 1
    %v463 = vmax.f32 %v461, %v462
    %v464 = vrot.slane %v438, 4
    %v465 = vmax.f32 %v438, %v464
    %v466 = vrot.slane %v465, 2
    %v467 = vmax.f32 %v465, %v466
    %v468 = vrot.slane %v467, 1
    %v469 = vmax.f32 %v467, %v468
    %v470 = vrot.slane %v439, 4
    %v471 = vmax.f32 %v439, %v470
    %v472 = vrot.slane %v471, 2
    %v473 = vmax.f32 %v471, %v472
    %v474 = vrot.slane %v473, 1
    %v475 = vmax.f32 %v473, %v474
    %v476 = vrot.slane %v440, 4
    %v477 = vmax.f32 %v440, %v476
    %v478 = vrot.slane %v477, 2
    %v479 = vmax.f32 %v477, %v478
    %v480 = vrot.slane %v479, 1
    %v481 = vmax.f32 %v479, %v480
    %v482 = vrot.slane %v441, 4
    %v483 = vmax.f32 %v441, %v482
    %v484 = vrot.slane %v483, 2
    %v485 = vmax.f32 %v483, %v484
    %v486 = vrot.slane %v485, 1
    %v487 = vmax.f32 %v485, %v486
    %v488 = vrot.slane %v442, 4
    %v489 = vmax.f32 %v442, %v488
    %v490 = vrot.slane %v489, 2
    %v491 = vmax.f32 %v489, %v490
    %v492 = vrot.slane %v491, 1
    %v493 = vmax.f32 %v491, %v492
    %v494 = vrot.slane %v443, 4
    %v495 = vmax.f32 %v443, %v494
    %v496 = vrot.slane %v495, 2
    %v497 = vmax.f32 %v495, %v496
    %v498 = vrot.slane %v497, 1
    %v499 = vmax.f32 %v497, %v498
    %v500 = vrot.slane %v444, 4
    %v501 = vmax.f32 %v444, %v500
    %v502 = vrot.slane %v501, 2
    %v503 = vmax.f32 %v501, %v502
    %v504 = vrot.slane %v503, 1
    %v505 = vmax.f32 %v503, %v504
    %v506 = vrot.slane %v445, 4
    %v507 = vmax.f32 %v445, %v506
    %v508 = vrot.slane %v507, 2
    %v509 = vmax.f32 %v507, %v508
    %v510 = vrot.slane %v509, 1
    %v511 = vmax.f32 %v509, %v510
    %v512 = vrot.slane %v446, 4
    %v513 = vmax.f32 %v446, %v512
    %v514 = vrot.slane %v513, 2
    %v515 = vmax.f32 %v513, %v514
    %v516 = vrot.slane %v515, 1
    %v517 = vmax.f32 %v515, %v516
    %v518 = vrot.slane %v447, 4
    %v519 = vmax.f32 %v447, %v518
    %v520 = vrot.slane %v519, 2
    %v521 = vmax.f32 %v519, %v520
    %v522 = vrot.slane %v521, 1
    %v523 = vmax.f32 %v521, %v522
    %v524 = vrot.slane %v448, 4
    %v525 = vmax.f32 %v448, %v524
    %v526 = vrot.slane %v525, 2
    %v527 = vmax.f32 %v525, %v526
    %v528 = vrot.slane %v527, 1
    %v529 = vmax.f32 %v527, %v528
    %v530 = vrot.slane %v449, 4
    %v531 = vmax.f32 %v449, %v530
    %v532 = vrot.slane %v531, 2
    %v533 = vmax.f32 %v531, %v532
    %v534 = vrot.slane %v533, 1
    %v535 = vmax.f32 %v533, %v534
    %v536 = vrot.slane %v450, 4
    %v537 = vmax.f32 %v450, %v536
    %v538 = vrot.slane %v537, 2
    %v539 = vmax.f32 %v537, %v538
    %v540 = vrot.slane %v539, 1
    %v541 = vmax.f32 %v539, %v540
    %v542 = vrot.slane %v451, 4
    %v543 = vmax.f32 %v451, %v542
    %v544 = vrot.slane %v543, 2
    %v545 = vmax.f32 %v543, %v544
    %v546 = vrot.slane %v545, 1
    %v547 = vmax.f32 %v545, %v546
    %v548 = vsub.f32 %v436, %v457
    %v549 = vsub.f32 %v437, %v463
    %v550 = vsub.f32 %v438, %v469
    %v551 = vsub.f32 %v439, %v475
    %v552 = vsub.f32 %v440, %v481
    %v553 = vsub.f32 %v441, %v487
    %v554 = vsub.f32 %v442, %v493
    %v555 = vsub.f32 %v443, %v499
    %v556 = vsub.f32 %v444, %v505
    %v557 = vsub.f32 %v445, %v511
    %v558 = vsub.f32 %v446, %v517
    %v559 = vsub.f32 %v447, %v523
    %v560 = vsub.f32 %v448, %v529
    %v561 = vsub.f32 %v449, %v535
    %v562 = vsub.f32 %v450, %v541
    %v563 = vsub.f32 %v451, %v547
    %v564 = vmul.f32 %v548, 1.442695
    %v565 = vpow.pop %v564
    %v566 = vmul.f32 %v549, 1.442695
    %v567 = vpow.pop %v566
    %v568 = vmul.f32 %v550, 1.442695
    %v569 = vpow.pop %v568
    %v570 = vmul.f32 %v551, 1.442695
    %v571 = vpow.pop %v570
    %v572 = vmul.f32 %v552, 1.442695
    %v573 = vpow.pop %v572
    %v574 = vmul.f32 %v553, 1.442695
    %v575 = vpow.pop %v574
    %v576 = vmul.f32 %v554, 1.442695
    %v577 = vpow.pop %v576
    %v578 = vmul.f32 %v555, 1.442695
    %v579 = vpow.pop %v578
    %v580 = vmul.f32 %v556, 1.442695
    %v581 = vpow.pop %v580
    %v582 = vmul.f32 %v557, 1.442695
    %v583 = vpow.pop %v582
    %v584 = vmul.f32 %v558, 1.442695
    %v585 = vpow.pop %v584
    %v586 = vmul.f32 %v559, 1.442695
    %v587 = vpow.pop %v586
    %v588 = vmul.f32 %v560, 1.442695
    %v589 = vpow.pop %v588
    %v590 = vmul.f32 %v561, 1.442695
    %v591 = vpow.pop %v590
    %v592 = vmul.f32 %v562, 1.442695
    %v593 = vpow.pop %v592
    %v594 = vmul.f32 %v563, 1.442695
    %v595 = vpow.pop %v594
    %v596 = vrot.slane %v565, 4
    %v597 = vadd.f32 %v565, %v596
    %v598 = vrot.slane %v597, 2
    %v599 = vadd.f32 %v597, %v598
    %v600 = vrot.slane %v599, 1
    %v601 = vadd.f32 %v599, %v600
    %v602 = vrot.slane %v567, 4
    %v603 = vadd.f32 %v567, %v602
    %v604 = vrot.slane %v603, 2
    %v605 = vadd.f32 %v603, %v604
    %v606 = vrot.slane %v605, 1
    %v607 = vadd.f32 %v605, %v606
    %v608 = vrot.slane %v569, 4
    %v609 = vadd.f32 %v569, %v608
    %v610 = vrot.slane %v609, 2
    %v611 = vadd.f32 %v609, %v610
    %v612 = vrot.slane %v611, 1
    %v613 = vadd.f32 %v611, %v612
    %v614 = vrot.slane %v571, 4
    %v615 = vadd.f32 %v571, %v614
    %v616 = vrot.slane %v615, 2
    %v617 = vadd.f32 %v615, %v616
    %v618 = vrot.slane %v617, 1
    %v619 = vadd.f32 %v617, %v618
    %v620 = vrot.slane %v573, 4
    %v621 = vadd.f32 %v573, %v620
    %v622 = vrot.slane %v621, 2
    %v623 = vadd.f32 %v621, %v622
    %v624 = vrot.slane %v623, 1
    %v625 = vadd.f32 %v623, %v624
    %v626 = vrot.slane %v575, 4
    %v627 = vadd.f32 %v575, %v626
    %v628 = vrot.slane %v627, 2
    %v629 = vadd.f32 %v627, %v628
    %v630 = vrot.slane %v629, 1
    %v631 = vadd.f32 %v629, %v630
    %v632 = vrot.slane %v577, 4
    %v633 = vadd.f32 %v577, %v632
    %v634 = vrot.slane %v633, 2
    %v635 = vadd.f32 %v633, %v634
    %v636 = vrot.slane %v635, 1
    %v637 = vadd.f32 %v635, %v636
    %v638 = vrot.slane %v579, 4
    %v639 = vadd.f32 %v579, %v638
    %v640 = vrot.slane %v639, 2
    %v641 = vadd.f32 %v639, %v640
    %v642 = vrot.slane %v641, 1
    %v643 = vadd.f32 %v641, %v642
    %v644 = vrot.slane %v581, 4
    %v645 = vadd.f32 %v581, %v644
    %v646 = vrot.slane %v645, 2
    %v647 = vadd.f32 %v645, %v646
    %v648 = vrot.slane %v647, 1
    %v649 = vadd.f32 %v647, %v648
    %v650 = vrot.slane %v583, 4
    %v651 = vadd.f32 %v583, %v650
    %v652 = vrot.slane %v651, 2
    %v653 = vadd.f32 %v651, %v652
    %v654 = vrot.slane %v653, 1
    %v655 = vadd.f32 %v653, %v654
    %v656 = vrot.slane %v585, 4
    %v657 = vadd.f32 %v585, %v656
    %v658 = vrot.slane %v657, 2
    %v659 = vadd.f32 %v657, %v658
    %v660 = vrot.slane %v659, 1
    %v661 = vadd.f32 %v659, %v660
    %v662 = vrot.slane %v587, 4
    %v663 = vadd.f32 %v587, %v662
    %v664 = vrot.slane %v663, 2
    %v665 = vadd.f32 %v663, %v664
    %v666 = vrot.slane %v665, 1
    %v667 = vadd.f32 %v665, %v666
    %v668 = vrot.slane %v589, 4
    %v669 = vadd.f32 %v589, %v668
    %v670 = vrot.slane %v669, 2
    %v671 = vadd.f32 %v669, %v670
    %v672 = vrot.slane %v671, 1
    %v673 = vadd.f32 %v671, %v672
    %v674 = vrot.slane %v591, 4
    %v675 = vadd.f32 %v591, %v674
    %v676 = vrot.slane %v675, 2
    %v677 = vadd.f32 %v675, %v676
    %v678 = vrot.slane %v677, 1
    %v679 = vadd.f32 %v677, %v678
    %v680 = vrot.slane %v593, 4
    %v681 = vadd.f32 %v593, %v680
    %v682 = vrot.slane %v681, 2
    %v683 = vadd.f32 %v681, %v682
    %v684 = vrot.slane %v683, 1
    %v685 = vadd.f32 %v683, %v684
    %v686 = vrot.slane %v595, 4
    %v687 = vadd.f32 %v595, %v686
    %v688 = vrot.slane %v687, 2
    %v689 = vadd.f32 %v687, %v688
    %v690 = vrot.slane %v689, 1
    %v691 = vadd.f32 %v689, %v690
    %v692 = vrcp.pop %v601
    %v693 = vrcp.pop %v607
    %v694 = vrcp.pop %v613
    %v695 = vrcp.pop %v619
    %v696 = vrcp.pop %v625
    %v697 = vrcp.pop %v631
    %v698 = vrcp.pop %v637
    %v699 = vrcp.pop %v643
    %v700 = vrcp.pop %v649
    %v701 = vrcp.pop %v655
    %v702 = vrcp.pop %v661
    %v703 = vrcp.pop %v667
    %v704 = vrcp.pop %v673
    %v705 = vrcp.pop %v679
    %v706 = vrcp.pop %v685
    %v707 = vrcp.pop %v691
    %v708 = vmul.f32 %v565, %v692
    %v709 = vmul.f32 %v567, %v693
    %v710 = vmul.f32 %v569, %v694
    %v711 = vmul.f32 %v571, %v695
    %v712 = vmul.f32 %v573, %v696
    %v713 = vmul.f32 %v575, %v697
    %v714 = vmul.f32 %v577, %v698
    %v715 = vmul.f32 %v579, %v699
    %v716 = vmul.f32 %v581, %v700
    %v717 = vmul.f32 %v583, %v701
    %v718 = vmul.f32 %v585, %v702
    %v719 = vmul.f32 %v587, %v703
    %v720 = vmul.f32 %v589, %v704
    %v721 = vmul.f32 %v591, %v705
    %v722 = vmul.f32 %v593, %v706
    %v723 = vmul.f32 %v595, %v707
    %v724 = vmul.f32 %v708, %v120
    %v725 = vmul.f32 %v709, %v121
    %v726 = vmul.f32 %v710, %v122
    %v727 = vmul.f32 %v711, %v123
    %v728 = vmul.f32 %v712, %v124
    %v729 = vmul.f32 %v713, %v125
    %v730 = vmul.f32 %v714, %v126
    %v731 = vmul.f32 %v715, %v127
    %v732 = vmul.f32 %v716, %v128
    %v733 = vmul.f32 %v717, %v129
    %v734 = vmul.f32 %v718, %v130
    %v735 = vmul.f32 %v719, %v131
    %v736 = vmul.f32 %v720, %v132
    %v737 = vmul.f32 %v721, %v133
    %v738 = vmul.f32 %v722, %v134
    %v739 = vmul.f32 %v723, %v135
    %v740 = vrot.slane %v724, 4
    %v741 = vadd.f32 %v724, %v740
    %v742 = vrot.slane %v741, 2
    %v743 = vadd.f32 %v741, %v742
    %v744 = vrot.slane %v743, 1
    %v745 = vadd.f32 %v743, %v744
    %v746 = vrot.slane %v725, 4
    %v747 = vadd.f32 %v725, %v746
    %v748 = vrot.slane %v747, 2
    %v749 = vadd.f32 %v747, %v748
    %v750 = vrot.slane %v749, 1
    %v751 = vadd.f32 %v749, %v750
    %v752 = vrot.slane %v726, 4
    %v753 = vadd.f32 %v726, %v752
    %v754 = vrot.slane %v753, 2
    %v755 = vadd.f32 %v753, %v754
    %v756 = vrot.slane %v755, 1
    %v757 = vadd.f32 %v755, %v756
    %v758 = vrot.slane %v727, 4
    %v759 = vadd.f32 %v727, %v758
    %v760 = vrot.slane %v759, 2
    %v761 = vadd.f32 %v759, %v760
    %v762 = vrot.slane %v761, 1
    %v763 = vadd.f32 %v761, %v762
    %v764 = vrot.slane %v728, 4
    %v765 = vadd.f32 %v728, %v764
    %v766 = vrot.slane %v765, 2
    %v767 = vadd.f32 %v765, %v766
    %v768 = vrot.slane %v767, 1
    %v769 = vadd.f32 %v767, %v768
    %v770 = vrot.slane %v729, 4
    %v771 = vadd.f32 %v729, %v770
    %v772 = vrot.slane %v771, 2
    %v773 = vadd.f32 %v771, %v772
    %v774 = vrot.slane %v773, 1
    %v775 = vadd.f32 %v773, %v774
    %v776 = vrot.slane %v730, 4
    %v777 = vadd.f32 %v730, %v776
    %v778 = vrot.slane %v777, 2
    %v779 = vadd.f32 %v777, %v778
    %v780 = vrot.slane %v779, 1
    %v781 = vadd.f32 %v779, %v780
    %v782 = vrot.slane %v731, 4
    %v783 = vadd.f32 %v731, %v782
    %v784 = vrot.slane %v783, 2
    %v785 = vadd.f32 %v783, %v784
    %v786 = vrot.slane %v785, 1
    %v787 = vadd.f32 %v785, %v786
    %v788 = vrot.slane %v732, 4
    %v789 = vadd.f32 %v732, %v788
    %v790 = vrot.slane %v789, 2
    %v791 = vadd.f32 %v789, %v790
    %v792 = vrot.slane %v791, 1
    %v793 = vadd.f32 %v791, %v792
    %v794 = vrot.slane %v733, 4
    %v795 = vadd.f32 %v733, %v794
    %v796 = vrot.slane %v795, 2
    %v797 = vadd.f32 %v795, %v796
    %v798 = vrot.slane %v797, 1
    %v799 = vadd.f32 %v797, %v798
    %v800 = vrot.slane %v734, 4
    %v801 = vadd.f32 %v734, %v800
    %v802 = vrot.slane %v801, 2
    %v803 = vadd.f32 %v801, %v802
    %v804 = vrot.slane %v803, 1
    %v805 = vadd.f32 %v803, %v804
    %v806 = vrot.slane %v735, 4
    %v807 = vadd.f32 %v735, %v806
    %v808 = vrot.slane %v807, 2
    %v809 = vadd.f32 %v807, %v808
    %v810 = vrot.slane %v809, 1
    %v811 = vadd.f32 %v809, %v810
    %v812 = vrot.slane %v736, 4
    %v813 = vadd.f32 %v736, %v812
    %v814 = vrot.slane %v813, 2
    %v815 = vadd.f32 %v813, %v814
    %v816 = vrot.slane %v815, 1
    %v817 = vadd.f32 %v815, %v816
    %v818 = vrot.slane %v737, 4
    %v819 = vadd.f32 %v737, %v818
    %v820 = vrot.slane %v819, 2
    %v821 = vadd.f32 %v819, %v820
    %v822 = vrot.slane %v821, 1
    %v823 = vadd.f32 %v821, %v822
    %v824 = vrot.slane %v738, 4
    %v825 = vadd.f32 %v738, %v824
    %v826 = vrot.slane %v825, 2
    %v827 = vadd.f32 %v825, %v826
    %v828 = vrot.slane %v827, 1
    %v829 = vadd.f32 %v827, %v828
    %v830 = vrot.slane %v739, 4
    %v831 = vadd.f32 %v739, %v830
    %v832 = vrot.slane %v831, 2
    %v833 = vadd.f32 %v831, %v832
    %v834 = vrot.slane %v833, 1
    %v835 = vadd.f32 %v833, %v834
    %836 = vmatprep.subr.mxu0 0.0
    %837 = vmatpush1.msra.mxu0 %v191
    %838 = vmatprep.subr.mxu0 0.0
    %839 = vmatpush1.msra.mxu0 %v190
    %840 = vmatprep.subr.mxu0 0.0
    %841 = vmatpush1.msra.mxu0 %v189
    %842 = vmatprep.subr.mxu0 0.0
    %843 = vmatpush1.msra.mxu0 %v188
    %844 = vmatprep.subr.mxu0 0.0
    %845 = vmatpush1.msra.mxu0 %v187
    %846 = vmatprep.subr.mxu0 0.0
    %847 = vmatpush1.msra.mxu0 %v186
    %848 = vmatprep.subr.mxu0 0.0
    %849 = vmatpush1.msra.mxu0 %v185
    %850 = vmatprep.subr.mxu0 0.0
    %851 = vmatpush1.msra.mxu0 %v184
    %852 = vmatprep.subr.mxu0 0.0
    %853 = vmatpush1.msra.mxu0 %v183
    %854 = vmatprep.subr.mxu0 0.0
    %855 = vmatpush1.msra.mxu0 %v182
    %856 = vmatprep.subr.mxu0 0.0
    %857 = vmatpush1.msra.mxu0 %v181
    %858 = vmatprep.subr.mxu0 0.0
    %859 = vmatpush1.msra.mxu0 %v180
    %860 = vmatprep.subr.mxu0 0.0
    %861 = vmatpush1.msra.mxu0 %v179
    %862 = vmatprep.subr.mxu0 0.0
    %863 = vmatpush1.msra.mxu0 %v178
    %864 = vmatprep.subr.mxu0 0.0
    %865 = vmatpush1.msra.mxu0 %v177
    %866 = vmatprep.subr.mxu0 0.0
    %867 = vmatpush1.msra.mxu0 %v176
    %868 = vmatprep.subr.mxu0 0.0
    %869 = vmatpush2.msra.mxu0 0.0
    %870 = vmatprep.subr.mxu0 0.0
    %871 = vmatpush2.msra.mxu0 0.0
    %872 = vmatprep.subr.mxu0 0.0
    %873 = vmatpush2.msra.mxu0 0.0
    %874 = vmatprep.subr.mxu0 0.0
    %875 = vmatpush2.msra.mxu0 0.0
    %876 = vmatprep.subr.mxu0 0.0
    %877 = vmatpush2.msra.mxu0 0.0
    %878 = vmatprep.subr.mxu0 0.0
    %879 = vmatpush2.msra.mxu0 0.0
    %880 = vmatprep.subr.mxu0 0.0
    %881 = vmatpush2.msra.mxu0 0.0
    %882 = vmatprep.subr.mxu0 0.0
    %883 = vmatpush2.msra.mxu0 0.0
    %884 = vmatprep.subr.mxu0 0.0
    %885 = vmatpush2.msra.mxu0 0.0
    %886 = vmatprep.subr.mxu0 0.0
    %887 = vmatpush2.msra.mxu0 0.0
    %888 = vmatprep.subr.mxu0 0.0
    %889 = vmatpush2.msra.mxu0 0.0
    %890 = vmatprep.subr.mxu0 0.0
    %891 = vmatpush2.msra.mxu0 0.0
    %892 = vmatprep.subr.mxu0 0.0
    %893 = vmatpush2.msra.mxu0 0.0
    %894 = vmatprep.subr.mxu0 0.0
    %895 = vmatpush2.msra.mxu0 0.0
    %896 = vmatprep.subr.mxu0 0.0
    %897 = vmatpush2.msra.mxu0 0.0
    %898 = vmatprep.subr.mxu0 0.0
    %899 = vmatpush2.msra.mxu0 0.0
    %900 = vmatprep.mubr.f32.mxu0 0.0
    %901 = vmatmul.mubr.f32.gmra.mxu0 %v168
    %v902 = vpop.f32.mrf.mxu0
    %v903 = vadd.f32 0.0, %v902
    %v904 = vpop.f32.mrf.mxu0
    %905 = vmatprep.mubr.f32.mxu0 0.0
    %906 = vmatmul.mubr.f32.gmra.mxu0 %v169
    %v907 = vpop.f32.mrf.mxu0
    %v908 = vadd.f32 0.0, %v907
    %v909 = vpop.f32.mrf.mxu0
    %910 = vdwg.mxu0
    %v911 = vlaneseq
    %v912 = vshrl.u32 %v911, 7
    %v913 = vsub.s32 0, %v912
    %v914 = vrot.slane %v175, %v913
    %915 = vmatprep.subr.mxu0 0.0
    %916 = vmatpush1.msra.mxu0 %v207
    %917 = vmatprep.subr.mxu0 0.0
    %918 = vmatpush1.msra.mxu0 %v206
    %919 = vmatprep.subr.mxu0 0.0
    %920 = vmatpush1.msra.mxu0 %v205
    %921 = vmatprep.subr.mxu0 0.0
    %922 = vmatpush1.msra.mxu0 %v204
    %923 = vmatprep.subr.mxu0 0.0
    %924 = vmatpush1.msra.mxu0 %v203
    %925 = vmatprep.subr.mxu0 0.0
    %926 = vmatpush1.msra.mxu0 %v202
    %927 = vmatprep.subr.mxu0 0.0
    %928 = vmatpush1.msra.mxu0 %v201
    %929 = vmatprep.subr.mxu0 0.0
    %930 = vmatpush1.msra.mxu0 %v200
    %931 = vmatprep.subr.mxu0 0.0
    %932 = vmatpush1.msra.mxu0 %v199
    %933 = vmatprep.subr.mxu0 0.0
    %934 = vmatpush1.msra.mxu0 %v198
    %935 = vmatprep.subr.mxu0 0.0
    %936 = vmatpush1.msra.mxu0 %v197
    %937 = vmatprep.subr.mxu0 0.0
    %938 = vmatpush1.msra.mxu0 %v196
    %939 = vmatprep.subr.mxu0 0.0
    %940 = vmatpush1.msra.mxu0 %v195
    %941 = vmatprep.subr.mxu0 0.0
    %942 = vmatpush1.msra.mxu0 %v194
    %943 = vmatprep.subr.mxu0 0.0
    %944 = vmatpush1.msra.mxu0 %v193
    %945 = vmatprep.subr.mxu0 0.0
    %946 = vmatpush1.msra.mxu0 %v192
    %947 = vmatprep.subr.mxu0 0.0
    %948 = vmatpush2.msra.mxu0 0.0
    %949 = vmatprep.subr.mxu0 0.0
    %950 = vmatpush2.msra.mxu0 0.0
    %951 = vmatprep.subr.mxu0 0.0
    %952 = vmatpush2.msra.mxu0 0.0
    %953 = vmatprep.subr.mxu0 0.0
    %954 = vmatpush2.msra.mxu0 0.0
    %955 = vmatprep.subr.mxu0 0.0
    %956 = vmatpush2.msra.mxu0 0.0
    %957 = vmatprep.subr.mxu0 0.0
    %958 = vmatpush2.msra.mxu0 0.0
    %959 = vmatprep.subr.mxu0 0.0
    %960 = vmatpush2.msra.mxu0 0.0
    %961 = vmatprep.subr.mxu0 0.0
    %962 = vmatpush2.msra.mxu0 0.0
    %963 = vmatprep.subr.mxu0 0.0
    %964 = vmatpush2.msra.mxu0 0.0
    %965 = vmatprep.subr.mxu0 0.0
    %966 = vmatpush2.msra.mxu0 0.0
    %967 = vmatprep.subr.mxu0 0.0
    %968 = vmatpush2.msra.mxu0 0.0
    %969 = vmatprep.subr.mxu0 0.0
    %970 = vmatpush2.msra.mxu0 0.0
    %971 = vmatprep.subr.mxu0 0.0
    %972 = vmatpush2.msra.mxu0 0.0
    %973 = vmatprep.subr.mxu0 0.0
    %974 = vmatpush2.msra.mxu0 0.0
    %975 = vmatprep.subr.mxu0 0.0
    %976 = vmatpush2.msra.mxu0 0.0
    %977 = vmatprep.subr.mxu0 0.0
    %978 = vmatpush2.msra.mxu0 0.0
    %979 = vmatprep.mubr.f32.mxu0 0.0
    %980 = vmatmul.mubr.f32.gmra.mxu0 %v170
    %v981 = vpop.f32.mrf.mxu0
    %v982 = vadd.f32 %v914, %v981
    %v983 = vpop.f32.mrf.mxu0
    %984 = vmatprep.mubr.f32.mxu0 0.0
    %985 = vmatmul.mubr.f32.gmra.mxu0 %v171
    %v986 = vpop.f32.mrf.mxu0
    %v987 = vadd.f32 %v914, %v986
    %v988 = vpop.f32.mrf.mxu0
    %989 = vdwg.mxu0
    %v990 = vxor.u32 %v982, 2147483648
    %v991 = vxor.u32 %v987, 2147483648
    %v992 = vmul.f32 %v990, 1.442695
    %v993 = vpow.pop %v992
    %v994 = vmul.f32 %v991, 1.442695
    %v995 = vpow.pop %v994
    %v996 = vadd.f32 %v993, 1.0
    %v997 = vadd.f32 %v995, 1.0
    %v998 = vrcp.pop %v996
    %v999 = vmul.f32 1.0, %v998
    %v1000 = vrcp.pop %v997
    %v1001 = vmul.f32 1.0, %v1000
    %v1004 = vrot.slane %v903, 1
    %v1005 = vrot.slane %v903, 2
    %v1006 = vrot.slane %v903, 3
    %v1007 = vrot.slane %v903, 4
    %v1008 = vrot.slane %v903, 5
    %v1009 = vrot.slane %v903, 6
    %v1010 = vrot.slane %v903, 7
    %v1011 = vrot.slane %v908, 1
    %v1012 = vrot.slane %v908, 2
    %v1013 = vrot.slane %v908, 3
    %v1014 = vrot.slane %v908, 4
    %v1015 = vrot.slane %v908, 5
    %v1016 = vrot.slane %v908, 6
    %v1017 = vrot.slane %v908, 7
    %v1034 = vadd.f32 %v745, %v903
    %v1035 = vadd.f32 %v751, %v1004
    %v1036 = vadd.f32 %v757, %v1005
    %v1037 = vadd.f32 %v763, %v1006
    %v1038 = vadd.f32 %v769, %v1007
    %v1039 = vadd.f32 %v775, %v1008
    %v1040 = vadd.f32 %v781, %v1009
    %v1041 = vadd.f32 %v787, %v1010
    %v1042 = vadd.f32 %v793, %v908
    %v1043 = vadd.f32 %v799, %v1011
    %v1044 = vadd.f32 %v805, %v1012
    %v1045 = vadd.f32 %v811, %v1013
    %v1046 = vadd.f32 %v817, %v1014
    %v1047 = vadd.f32 %v823, %v1015
    %v1048 = vadd.f32 %v829, %v1016
    %v1049 = vadd.f32 %v835, %v1017
    %v1066 = vrot.slane %v1035, 7
    %vm1067 = vcmask 1041409
    %v1068 = vsel %vm1067, %v1066, %v1034
    %v1069 = vrot.slane %v1036, 6
    %vm1070 = vcmask 1042434
    %v1071 = vsel %vm1070, %v1069, %v1068
    %v1072 = vrot.slane %v1037, 5
    %vm1073 = vcmask 1043459
    %v1074 = vsel %vm1073, %v1072, %v1071
    %v1075 = vrot.slane %v1038, 4
    %vm1076 = vcmask 1044484
    %v1077 = vsel %vm1076, %v1075, %v1074
    %v1078 = vrot.slane %v1039, 3
    %vm1079 = vcmask 1045509
    %v1080 = vsel %vm1079, %v1078, %v1077
    %v1081 = vrot.slane %v1040, 2
    %vm1082 = vcmask 1046534
    %v1083 = vsel %vm1082, %v1081, %v1080
    %v1084 = vrot.slane %v1041, 1
    %vm1085 = vcmask 1047559
    %v1086 = vsel %vm1085, %v1084, %v1083
    %v1087 = vrot.slane %v1043, 7
    %v1088 = vsel %vm1067, %v1087, %v1042
    %v1089 = vrot.slane %v1044, 6
    %v1090 = vsel %vm1070, %v1089, %v1088
    %v1091 = vrot.slane %v1045, 5
    %v1092 = vsel %vm1073, %v1091, %v1090
    %v1093 = vrot.slane %v1046, 4
    %v1094 = vsel %vm1076, %v1093, %v1092
    %v1095 = vrot.slane %v1047, 3
    %v1096 = vsel %vm1079, %v1095, %v1094
    %v1097 = vrot.slane %v1048, 2
    %v1098 = vsel %vm1082, %v1097, %v1096
    %v1099 = vrot.slane %v1049, 1
    %v1100 = vsel %vm1085, %v1099, %v1098
    %v1103 = vmul.f32 %v999, %v1086
    %v1104 = vmul.f32 %v1001, %v1100
    %v1105 = vsub.f32 1.0, %v999
    %v1106 = vsub.f32 1.0, %v1001
    %v1107 = vmul.f32 %v1105, %v170
    %v1108 = vmul.f32 %v1106, %v171
    %v1109 = vadd.f32 %v1103, %v1107
    %v1110 = vadd.f32 %v1104, %v1108
    %v1111 = vmax.f32 %v1109, 0.0
    %v1112 = vmax.f32 %v1110, 0.0
    %1113 = vst [vmem:[#allocation13] sm:$0xff] %v1111
    %1114 = vst [vmem:[#allocation13 + $0x8] sm:$0xff] %v1112
    // Predicated region
    $region50: #{tpu_custom_call.1} parent=1 // pred_check
      _
    $region51: #{tpu_custom_call.1} parent=1 // pred_check_branch
      %1116 = sbr.rel (0) target = $region53
    $region52: #{tpu_custom_call.1} parent=1 // pred_region
      %s1118 = ssub.s32 256, 256
      %1119 = vsyncadd [#allocation4], %s1118
      %s1120 = sshll.u32 [#allocation13], 4
      %s1121 = int_to_ptr.vmem [resolvable:$true] %s1120
      %1126 = dma.vmem_to_hbm [thread:$0]  %s1121, 256, %s6, [#allocation4], 128, 128, 8
    $region53: #{tpu_custom_call.1} parent=1 // pred_fallthru
      _
    // Predicated region
    $region54: #{tpu_custom_call.1} parent=1 // pred_check
      _
    $region55: #{tpu_custom_call.1} parent=1 // pred_check_branch
      %1128 = sbr.rel (0) target = $region57
    $region56: #{tpu_custom_call.1} parent=1 // pred_region
      %1129 = dma.done [#allocation4], 256
    $region57: #{tpu_custom_call.1} parent=1 // pred_fallthru
      _
    %1130 = vsyncpa [#allocation3], 1
    %1131 = vsyncpa [#allocation6], 1
    %1132 = vsyncpa [#allocation9], 1
    %1133 = vsyncpa [#allocation12], 1
    %1134 = vsyncpa [#allocation4], 1

</llo_original>
